<compile_context>
chip_gen: v5e
topology: v5e:2x2
jax: 0.10.0
libtpu: 0.0.40
codegen_flags: <defaults>
</compile_context>

<pallas_src>
import functools
import math

import jax
import jax.numpy as jnp
from jax import lax
from jax.experimental import pallas as pl
from jax.experimental.pallas import tpu as pltpu

LANE = 128

# tanh-based erf approximation (same coefficients family as tanh-GELU):
#   erf(z) ~= tanh(_ERF_A * z + _ERF_C * z**3)     (max abs err ~5e-4)
_ERF_A = 2.0 / math.sqrt(math.pi)                       # 1.1283791670955126
_ERF_C = 0.044715 * 2.0 * math.sqrt(2.0) * math.sqrt(2.0 / math.pi)


def _round_up(a, b):
    return ((a + b - 1) // b) * b


def _smu_math(x, s0, s1, *, c1, c2, approx):
    """Shared elementwise math, evaluated entirely in x.dtype."""
    dt = x.dtype
    c1 = jnp.asarray(c1, dt)
    c2 = jnp.asarray(c2, dt)
    if approx:
        # erf(k*x) ~= tanh(A*x + B*x^3), A/B pre-folded with k in the wrapper.
        a = s0.astype(dt)
        b = s1.astype(dt)
        t = jnp.tanh(x * (a + b * (x * x)))    # tanh -> EUP slot; 4 VALU muls/adds
    else:
        t = lax.erf(s0.astype(dt) * x)         # exact parity with torch.erf
    return x * (c1 + c2 * t)


def _smu_kernel(scal_ref, x_ref, o_ref, *, c1, c2, approx):
    o_ref[...] = _smu_math(x_ref[...], scal_ref[0], scal_ref[1],
                           c1=c1, c2=c2, approx=approx)


def smu(x, mu, alpha=0.01, *, approx_erf=True,
        block_bytes=2 * 1024 * 1024, min_grid_steps=4):
    """Apply SMU elementwise. x: any shape/float dtype, mu: scalar (traced ok)."""
    orig_shape = x.shape
    dtype = x.dtype
    n = int(x.size)
    if n == 0:
        return x

    alpha = float(alpha)
    c1 = 0.5 * (1.0 + alpha)
    c2 = 0.5 * (1.0 - alpha)
    k = jnp.asarray(mu, jnp.float32) * (1.0 - alpha)
    if approx_erf:
        scal = jnp.stack([_ERF_A * k, _ERF_C * k * k * k])   # [A, B] folded with k
    else:
        scal = jnp.stack([k, jnp.zeros_like(k)])              # [k, unused]

    if n % LANE != 0:
        # Rare misaligned case: a fused-JAX elementwise pass is already a single
        # HBM read+write (no pad / un-pad copies, which were ~3x traffic).
        # TODO(synk): a 1-D masked-block Pallas path could keep this in-kernel.
        return _smu_math(x, scal[0], scal[1], c1=c1, c2=c2, approx=approx_erf)

    # Lane-dense 2-D view (pure reshape, no copy). Prefer a wider last dim when
    # it divides numel exactly -> unmasked, better-batched vector stores.
    cols = LANE
    for c in (1024, 512, 256):
        if n % c == 0:
            cols = c
            break
    rows = n // cols
    x2d = x.reshape(rows, cols)

    itemsize = jnp.dtype(dtype).itemsize
    sublane = max(8, 32 // itemsize)              # 8 f32, 16 bf16, 32 int8
    if rows <= sublane:
        rt = rows                                  # single full-extent block
    else:
        # ~block_bytes per block (HBM roofline plateau), dtype-scaled, but keep
        # >= min_grid_steps grid steps so DMA/compute overlap and v7x megacore
        # sharding actually kick in for medium inputs.
        rt_cap = block_bytes // (cols * itemsize)
        rt_cap = max((rt_cap // sublane) * sublane, sublane)
        rt = min(rt_cap, _round_up(pl.cdiv(rows, min_grid_steps), sublane))
    grid = (pl.cdiv(rows, rt),)

    out = pl.pallas_call(
        functools.partial(_smu_kernel, c1=c1, c2=c2, approx=approx_erf),
        out_shape=jax.ShapeDtypeStruct((rows, cols), dtype),
        grid_spec=pltpu.PrefetchScalarGridSpec(
            num_scalar_prefetch=0,
            grid=grid,
            in_specs=[
                pl.BlockSpec(memory_space=pltpu.SMEM),        # [s0, s1] scalars
                pl.BlockSpec((rt, cols), lambda i: (i, 0)),   # x tile
            ],
            out_specs=pl.BlockSpec((rt, cols), lambda i: (i, 0)),
        ),
        compiler_params=pltpu.CompilerParams(
            dimension_semantics=("parallel",),
            # in+out double-buffered 2 MiB blocks = 8 MiB; 32 MiB limit leaves
            # headroom on v5e/v6e and fits v7x's 64 MiB physical VMEM.
            vmem_limit_bytes=32 * 1024 * 1024,
        ),
    )(scal, x2d)

    return out.reshape(orig_shape)


def smu_reference(x, mu, alpha=0.01):
    """Pure-JAX reference matching the PyTorch forward (exact erf)."""
    return ((1.0 + alpha) * x
            + (1.0 - alpha) * x * lax.erf(mu * (1.0 - alpha) * x)) / 2.0


if __name__ == "__main__":
    key = jax.random.PRNGKey(0)

    # nn.Module defaults.
    alpha = 0.01
    mu = jnp.float32(2.5)   # torch.nn.Parameter(torch.tensor(2.5))

    # NCHW activation (lane-aligned fast path: 2*4*16*16 = 2048 elements).
    x = jax.random.normal(key, (2, 4, 16, 16), dtype=jnp.float32)
    y = jax.block_until_ready(smu(x, mu, alpha))
    y_ref = smu_reference(x, mu, alpha)
    assert y.shape == x.shape and y.dtype == x.dtype
    assert jnp.allclose(y, y_ref, atol=5e-3, rtol=0.0), "approx-erf path mismatch"

    # Exact-erf path (strict torch.erf parity) on a multi-step grid.
    x_big = jax.random.normal(jax.random.PRNGKey(2), (2, 8, 32, 32),
                              dtype=jnp.float32)
    y_exact = jax.block_until_ready(smu(x_big, mu, alpha, approx_erf=False))
    assert jnp.allclose(y_exact, smu_reference(x_big, mu, alpha),
                        atol=1e-5, rtol=1e-5), "exact-erf path mismatch"

    # Non-lane-aligned fallback (fused JAX, no pad/unpad HBM traffic).
    x_odd = jax.random.normal(jax.random.PRNGKey(1), (3, 5, 7), dtype=jnp.float32)
    y_odd = jax.block_until_ready(smu(x_odd, mu, alpha))
    assert jnp.allclose(y_odd, smu_reference(x_odd, mu, alpha),
                        atol=5e-3, rtol=0.0), "misaligned fallback mismatch"

    print("KERNEL_OK")
</pallas_src>

<mosaic_0001>
module attributes {stable_mosaic.version = 11 : i64} {
  func.func @_smu_kernel(%arg0: i32, %arg1: memref<2xf32, #tpu.memory_space<smem>>, %arg2: memref<2x1024xf32, #tpu.memory_space<vmem>>, %arg3: memref<2x1024xf32, #tpu.memory_space<vmem>>) attributes {dimension_semantics = [#tpu.dimension_semantics<parallel>], iteration_bounds = array<i64: 1>, scalar_prefetch = 0 : i64, scratch_operands = 0 : i64, tpu.core_type = #tpu.core_type<tc>, window_params = [{transform_indices = @transform_0, window_bounds = array<i64: 2>}, {transform_indices = @transform_1, window_bounds = array<i64: 2, 1024>}, {transform_indices = @transform_2, window_bounds = array<i64: 2, 1024>}]} {
    %c0 = arith.constant 0 : index
    %c0_0 = arith.constant 0 : index
    %0 = vector.load %arg2[%c0, %c0_0] : memref<2x1024xf32, #tpu.memory_space<vmem>>, vector<2x1024xf32>
    %c0_1 = arith.constant 0 : index
    %1 = memref.load %arg1[%c0_1] : memref<2xf32, #tpu.memory_space<smem>>
    %c1 = arith.constant 1 : index
    %2 = memref.load %arg1[%c1] : memref<2xf32, #tpu.memory_space<smem>>
    %3 = arith.mulf %0, %0 : vector<2x1024xf32>
    %4 = vector.broadcast %2 : f32 to vector<2x1024xf32>
    %5 = arith.mulf %4, %3 : vector<2x1024xf32>
    %6 = vector.broadcast %1 : f32 to vector<2x1024xf32>
    %7 = arith.addf %6, %5 : vector<2x1024xf32>
    %8 = arith.mulf %0, %7 : vector<2x1024xf32>
    %9 = math.tanh %8 : vector<2x1024xf32>
    %cst = arith.constant 4.950000e-01 : f32
    %10 = vector.broadcast %cst : f32 to vector<2x1024xf32>
    %11 = arith.mulf %10, %9 : vector<2x1024xf32>
    %cst_2 = arith.constant 5.050000e-01 : f32
    %12 = vector.broadcast %cst_2 : f32 to vector<2x1024xf32>
    %13 = arith.addf %12, %11 : vector<2x1024xf32>
    %14 = arith.mulf %0, %13 : vector<2x1024xf32>
    %c0_3 = arith.constant 0 : index
    %c0_4 = arith.constant 0 : index
    %15 = vector.load %arg3[%c0_3, %c0_4] : memref<2x1024xf32, #tpu.memory_space<vmem>>, vector<2x1024xf32>
    tpu.vector_store %arg3[%c0_3, %c0_4], %14 {strides = array<i32>} : memref<2x1024xf32, #tpu.memory_space<vmem>>, vector<2x1024xf32>,
    return
  }
  func.func @transform_0(%arg0: i32) -> i32 {
    %c0_i32 = arith.constant 0 : i32
    %c0_i32_0 = arith.constant 0 : i32
    return %c0_i32 : i32
  }
  func.func @transform_1(%arg0: i32) -> (i32, i32) {
    %c0_i32 = arith.constant 0 : i32
    %c0_i32_0 = arith.constant 0 : i32
    return %arg0, %c0_i32 : i32, i32
  }
  func.func @transform_2(%arg0: i32) -> (i32, i32) {
    %c0_i32 = arith.constant 0 : i32
    %c0_i32_0 = arith.constant 0 : i32
    return %arg0, %c0_i32 : i32, i32
  }
}

</mosaic_0001>

<llo_original>
// kernel: tpu_custom_call.1
$region0: #{tpu_custom_call.1}
  #allocation0 [shape = 'u32[]', space=smem, size = 0x4, offset = 0x4, fixed_abs, tag = 'smem constant byte address 0x4 - core index']
  #allocation1 [shape = 'u32[72,128]{1,0:T(1,128)}', space=vmem, size = 0x9000, scoped, tag = 'internal scratch']
  %s0 = inlined_call_operand.hbm [shape: f32[2], index: 0, kind: input, shape index: {}]
  %s1 = inlined_call_operand.hbm [shape: f32[2,1024], index: 1, kind: input, shape index: {}]
  %s2 = inlined_call_operand.hbm [shape: f32[2,1024], index: 2, kind: output, shape index: {}]
  %s3 = sld [smem:[#allocation0]]
  $region26: #{tpu_custom_call.1} parent=0
    _
  %s5 = ssub.s32 1, %s3
  %s6 = scalar_select 0, %s5, %s3
  $region1: #{tpu_custom_call.1} parent=0
    #allocation2 [shape = 'u8[512]{0}', space=smem, size = 0x200, scoped, tag = 'input window, operand 0, single buffered']
    #allocation3 [shape = 's32[1]{0}', space=sflag, size = 0x4, scoped, tag = 'scoped memory for tpu_custom_call.1']
    #allocation4 [shape = 's32[1]{0}', space=sflag, size = 0x4, scoped, tag = 'scoped memory for tpu_custom_call.1']
    #allocation5 [shape = 's32[1]{0}', space=sflag, size = 0x4, scoped, tag = 'scoped memory for tpu_custom_call.1']
    #allocation6 [shape = 'u8[8192]{0}', space=vmem, size = 0x2000, scoped, tag = 'input window, operand 1, single buffered']
    #allocation7 [shape = 'u8[8192]{0}', space=vmem, size = 0x2000, scoped, tag = 'output window, operand 0, single buffered']
    %7 = vsyncpa [#allocation5], 0
    %8 = vsyncpa [#allocation3], 0
    %9 = vsyncpa [#allocation4], 0
    // Predicated region
    $region2: #{tpu_custom_call.1} parent=1 // pred_check
      _
    $region3: #{tpu_custom_call.1} parent=1 // pred_check_branch
      %11 = sbr.rel (0) target = $region5
    $region4: #{tpu_custom_call.1} parent=1 // pred_region
      %13 = vsyncadd [#allocation5], 0
      %s15 = sshll.u32 %s0, 4
      %s16 = int_to_ptr.hbm [resolvable:$true] %s15
      %18 = dma.hbm_to_smem %s16, 16, [#allocation2], [#allocation5]
    $region5: #{tpu_custom_call.1} parent=1 // pred_fallthru
      _
    // Predicated region
    $region6: #{tpu_custom_call.1} parent=1 // pred_check
      _
    $region7: #{tpu_custom_call.1} parent=1 // pred_check_branch
      %20 = sbr.rel (0) target = $region9
    $region8: #{tpu_custom_call.1} parent=1 // pred_region
      %22 = vsyncadd [#allocation3], 0
      %s24 = sshll.u32 %s1, 4
      %s25 = int_to_ptr.hbm [resolvable:$true] %s24
      %s26 = sshll.u32 [#allocation6], 4
      %s27 = int_to_ptr.vmem [resolvable:$true] %s26
      %29 = dma.hbm_to_vmem [thread:$0]  %s25, 256, %s27, [#allocation3]
    $region9: #{tpu_custom_call.1} parent=1 // pred_fallthru
      _
    // Predicated region
    $region10: #{tpu_custom_call.1} parent=1 // pred_check
      _
    $region11: #{tpu_custom_call.1} parent=1 // pred_check_branch
      %31 = sbr.rel (0) target = $region13
    $region12: #{tpu_custom_call.1} parent=1 // pred_region
      %33 = dma.done [#allocation5], 16
    $region13: #{tpu_custom_call.1} parent=1 // pred_fallthru
      _
    // Predicated region
    $region14: #{tpu_custom_call.1} parent=1 // pred_check
      _
    $region15: #{tpu_custom_call.1} parent=1 // pred_check_branch
      %35 = sbr.rel (0) target = $region17
    $region16: #{tpu_custom_call.1} parent=1 // pred_region
      %37 = dma.done [#allocation3], 256
    $region17: #{tpu_custom_call.1} parent=1 // pred_fallthru
      _
    %38 = sfence
    %v39 = vld [vmem:[#allocation6] sm:$0xff]
    %v40 = vld [vmem:[#allocation6 + $0x8] sm:$0xff]
    %s41 = sld [smem:[#allocation2]]
    %s42 = sld [smem:[#allocation2 + $0x1]]
    %v43 = vmul.f32 %v39, %v39
    %v44 = vmul.f32 %v40, %v40
    %v45 = vstv %s42
    %v46 = vmul.f32 %v45, %v43
    %v47 = vmul.f32 %v45, %v44
    %v48 = vstv %s41
    %v49 = vadd.f32 %v48, %v46
    %v50 = vadd.f32 %v48, %v47
    %v51 = vmul.f32 %v39, %v49
    %v52 = vmul.f32 %v40, %v50
    %v53 = vtanh.pop %v51
    %v54 = vtanh.pop %v52
    %v55 = vmul.f32 %v53, 0.495
    %v56 = vmul.f32 %v54, 0.495
    %v57 = vadd.f32 %v55, 0.505
    %v58 = vadd.f32 %v56, 0.505
    %v59 = vmul.f32 %v39, %v57
    %v60 = vmul.f32 %v40, %v58
    %61 = vst [vmem:[#allocation7] sm:$0xff] %v59
    %62 = vst [vmem:[#allocation7 + $0x8] sm:$0xff] %v60
    // Predicated region
    $region18: #{tpu_custom_call.1} parent=1 // pred_check
      _
    $region19: #{tpu_custom_call.1} parent=1 // pred_check_branch
      %64 = sbr.rel (0) target = $region21
    $region20: #{tpu_custom_call.1} parent=1 // pred_region
      %66 = vsyncadd [#allocation4], 0
      %s68 = sshll.u32 [#allocation7], 4
      %s69 = int_to_ptr.vmem [resolvable:$true] %s68
      %s70 = sshll.u32 %s2, 4
      %s71 = int_to_ptr.hbm [resolvable:$true] %s70
      %73 = dma.vmem_to_hbm [thread:$0]  %s69, 256, %s71, [#allocation4]
    $region21: #{tpu_custom_call.1} parent=1 // pred_fallthru
      _
    // Predicated region
    $region22: #{tpu_custom_call.1} parent=1 // pred_check
      _
    $region23: #{tpu_custom_call.1} parent=1 // pred_check_branch
      %75 = sbr.rel (0) target = $region25
    $region24: #{tpu_custom_call.1} parent=1 // pred_region
      %77 = dma.done [#allocation4], 256
    $region25: #{tpu_custom_call.1} parent=1 // pred_fallthru
      _
    %78 = vsyncpa [#allocation3], 1
    %79 = vsyncpa [#allocation4], 1
    %80 = vsyncpa [#allocation5], 1

</llo_original>
